<compile_context>
chip_gen: v5e
topology: v5e:2x2
jax: 0.10.0
libtpu: 0.0.40
codegen_flags: <defaults>
</compile_context>

<pallas_src>
import jax
import jax.numpy as jnp
from jax.experimental import pallas as pl
from jax.experimental.pallas import tpu as pltpu

# ----------------------------- Pallas kernel -------------------------------


def gcn_kernel(a_ref, x_ref, w_ref, b_ref, o_ref):
    # X @ W^T : (k_pad, fin_pad) @ (fin_pad, fout_pad) -> (k_pad, fout_pad)
    xw = jnp.dot(x_ref[...], w_ref[...], preferred_element_type=jnp.float32)
    # A_hat @ (X W^T) + b : (m_pad, k_pad) @ (k_pad, fout_pad) -> (m_pad, fout_pad)
    o_ref[...] = (
        jnp.dot(a_ref[...], xw, preferred_element_type=jnp.float32) + b_ref[...]
    )


def _round_up(x, m):
    return ((x + m - 1) // m) * m


def gcn_conv_pallas(a_hat, x, w, b):
    """a_hat: [N,N] normalized adjacency, x: [N,Fin], w: [Fout,Fin], b: [Fout]."""
    n, fin = x.shape
    fout = w.shape[0]

    # Tile-friendly padding:
    #   m_pad    : output rows / A rows        -> sublane multiple (8)
    #   k_pad    : A cols / X rows (2nd-dot K) -> lane-dense multiple (128)
    #   fin_pad  : 1st-dot contraction         -> sublane multiple (8) only
    #   fout_pad : output lanes                -> lane-dense multiple (128)
    m_pad = _round_up(n, 8)
    k_pad = _round_up(n, 128)
    fin_pad = _round_up(fin, 8)
    fout_pad = _round_up(fout, 128)

    a_p = jnp.pad(a_hat.astype(jnp.float32), ((0, m_pad - n), (0, k_pad - n)))
    x_p = jnp.pad(x.astype(jnp.float32), ((0, k_pad - n), (0, fin_pad - fin)))
    wt_p = jnp.pad(w.T.astype(jnp.float32), ((0, fin_pad - fin), (0, fout_pad - fout)))
    b_p = jnp.pad(b.astype(jnp.float32)[None, :], ((0, 0), (0, fout_pad - fout)))

    out_p = pl.pallas_call(
        gcn_kernel,
        out_shape=jax.ShapeDtypeStruct((m_pad, fout_pad), jnp.float32),
        grid=(1,),
        in_specs=[
            pl.BlockSpec((m_pad, k_pad), lambda i: (0, 0)),
            pl.BlockSpec((k_pad, fin_pad), lambda i: (0, 0)),
            pl.BlockSpec((fin_pad, fout_pad), lambda i: (0, 0)),
            pl.BlockSpec((1, fout_pad), lambda i: (0, 0)),
        ],
        out_specs=pl.BlockSpec((m_pad, fout_pad), lambda i: (0, 0)),
        compiler_params=pltpu.CompilerParams(
            dimension_semantics=("arbitrary",)
        ),
    )(a_p, x_p, wt_p, b_p)

    return out_p[:n, :fout]


# ------------------------------- glue / setup ------------------------------


def build_normalized_adjacency(edge_index, num_nodes):
    """Dense D^{-1/2} (A + I) D^{-1/2} with unit edge weights + self loops."""
    src, dst = edge_index[0], edge_index[1]
    a = jnp.zeros((num_nodes, num_nodes), jnp.float32)
    # A[dst, src] = 1 so that row i aggregates messages flowing into node i.
    a = a.at[dst, src].add(1.0)
    a = a + jnp.eye(num_nodes, dtype=jnp.float32)  # self loops
    deg = jnp.sum(a, axis=1)
    d_inv_sqrt = jnp.where(deg > 0, 1.0 / jnp.sqrt(deg), 0.0)
    return d_inv_sqrt[:, None] * a * d_inv_sqrt[None, :]


def gcn_forward(x, edge_index, weight, bias):
    num_nodes = x.shape[0]
    a_hat = build_normalized_adjacency(edge_index, num_nodes)
    return gcn_conv_pallas(a_hat, x, weight, bias)


# ----------------------------------- main -----------------------------------

if __name__ == "__main__":
    # Graph from the reference script.
    edge_index = jnp.array([[0, 1, 1, 2], [1, 0, 2, 1]], dtype=jnp.int32)
    x = jnp.array([[-1.0], [0.0], [1.0]], dtype=jnp.float32)

    # Deterministic parameter init: GCNConv(1, 2) -> weight [2,1], bias [2].
    key = jax.random.PRNGKey(0)
    kw, kb = jax.random.split(key)
    in_ch, out_ch = 1, 2
    # glorot-style scale for the linear weight, zeros for bias (PyG default).
    limit = (6.0 / (in_ch + out_ch)) ** 0.5
    weight = jax.random.uniform(
        kw, (out_ch, in_ch), dtype=jnp.float32, minval=-limit, maxval=limit
    )
    bias = jnp.zeros((out_ch,), jnp.float32)

    out = gcn_forward(x, edge_index, weight, bias)
    out = jax.block_until_ready(out)

    # Reference check in plain JAX (same math, no Pallas).
    a_hat = build_normalized_adjacency(edge_index, x.shape[0])
    ref = a_hat @ (x @ weight.T) + bias[None, :]
    assert out.shape == (3, 2)
    assert jnp.allclose(out, ref, atol=1e-5, rtol=1e-5)

    print("KERNEL_OK")
</pallas_src>

<mosaic_0001>
module attributes {stable_mosaic.version = 11 : i64} {
  func.func @gcn_kernel(%arg0: i32, %arg1: memref<8x128xf32, #tpu.memory_space<vmem>>, %arg2: memref<128x8xf32, #tpu.memory_space<vmem>>, %arg3: memref<8x128xf32, #tpu.memory_space<vmem>>, %arg4: memref<1x128xf32, #tpu.memory_space<vmem>>, %arg5: memref<8x128xf32, #tpu.memory_space<vmem>>) attributes {dimension_semantics = [#tpu.dimension_semantics<arbitrary>], iteration_bounds = array<i64: 1>, scalar_prefetch = 0 : i64, scratch_operands = 0 : i64, tpu.core_type = #tpu.core_type<tc>, window_params = [{pipeline_mode = #tpu.pipeline_mode<synchronous>, transform_indices = @transform_0, window_bounds = array<i64: 8, 128>}, {pipeline_mode = #tpu.pipeline_mode<synchronous>, transform_indices = @transform_1, window_bounds = array<i64: 128, 8>}, {pipeline_mode = #tpu.pipeline_mode<synchronous>, transform_indices = @transform_2, window_bounds = array<i64: 8, 128>}, {pipeline_mode = #tpu.pipeline_mode<synchronous>, transform_indices = @transform_3, window_bounds = array<i64: 1, 128>}, {pipeline_mode = #tpu.pipeline_mode<synchronous>, transform_indices = @transform_4, window_bounds = array<i64: 8, 128>}]} {
    %c0 = arith.constant 0 : index
    %c0_0 = arith.constant 0 : index
    %0 = vector.load %arg2[%c0, %c0_0] : memref<128x8xf32, #tpu.memory_space<vmem>>, vector<128x8xf32>
    %c0_1 = arith.constant 0 : index
    %c0_2 = arith.constant 0 : index
    %1 = vector.load %arg3[%c0_1, %c0_2] : memref<8x128xf32, #tpu.memory_space<vmem>>, vector<8x128xf32>
    %cst = arith.constant dense<0.000000e+00> : vector<128x128xf32>
    %2 = tpu.matmul %0, %1, %cst {dimension_numbers = #tpu.dot_dimension_numbers<[1], [0], [0], [1], [0, 0, 1, 1], [], []>} : vector<128x8xf32>, vector<8x128xf32>, vector<128x128xf32> -> vector<128x128xf32>
    %c0_3 = arith.constant 0 : index
    %c0_4 = arith.constant 0 : index
    %3 = vector.load %arg1[%c0_3, %c0_4] : memref<8x128xf32, #tpu.memory_space<vmem>>, vector<8x128xf32>
    %cst_5 = arith.constant dense<0.000000e+00> : vector<8x128xf32>
    %4 = tpu.matmul %3, %2, %cst_5 {dimension_numbers = #tpu.dot_dimension_numbers<[1], [0], [0], [1], [0, 0, 1, 1], [], []>} : vector<8x128xf32>, vector<128x128xf32>, vector<8x128xf32> -> vector<8x128xf32>
    %c0_6 = arith.constant 0 : index
    %c0_7 = arith.constant 0 : index
    %5 = vector.load %arg4[%c0_6, %c0_7] : memref<1x128xf32, #tpu.memory_space<vmem>>, vector<1x128xf32>
    %6 = vector.broadcast %5 : vector<1x128xf32> to vector<8x128xf32>
    %7 = arith.addf %4, %6 : vector<8x128xf32>
    %c0_8 = arith.constant 0 : index
    %c0_9 = arith.constant 0 : index
    %8 = vector.load %arg5[%c0_8, %c0_9] : memref<8x128xf32, #tpu.memory_space<vmem>>, vector<8x128xf32>
    tpu.vector_store %arg5[%c0_8, %c0_9], %7 {strides = array<i32>} : memref<8x128xf32, #tpu.memory_space<vmem>>, vector<8x128xf32>,
    return
  }
  func.func @transform_0(%arg0: i32) -> (i32, i32) {
    %c0_i32 = arith.constant 0 : i32
    %c0_i32_0 = arith.constant 0 : i32
    %c0_i32_1 = arith.constant 0 : i32
    return %c0_i32, %c0_i32_0 : i32, i32
  }
  func.func @transform_1(%arg0: i32) -> (i32, i32) {
    %c0_i32 = arith.constant 0 : i32
    %c0_i32_0 = arith.constant 0 : i32
    %c0_i32_1 = arith.constant 0 : i32
    return %c0_i32, %c0_i32_0 : i32, i32
  }
  func.func @transform_2(%arg0: i32) -> (i32, i32) {
    %c0_i32 = arith.constant 0 : i32
    %c0_i32_0 = arith.constant 0 : i32
    %c0_i32_1 = arith.constant 0 : i32
    return %c0_i32, %c0_i32_0 : i32, i32
  }
  func.func @transform_3(%arg0: i32) -> (i32, i32) {
    %c0_i32 = arith.constant 0 : i32
    %c0_i32_0 = arith.constant 0 : i32
    %c0_i32_1 = arith.constant 0 : i32
    return %c0_i32, %c0_i32_0 : i32, i32
  }
  func.func @transform_4(%arg0: i32) -> (i32, i32) {
    %c0_i32 = arith.constant 0 : i32
    %c0_i32_0 = arith.constant 0 : i32
    %c0_i32_1 = arith.constant 0 : i32
    return %c0_i32, %c0_i32_0 : i32, i32
  }
}

</mosaic_0001>

<llo_original>
// kernel: tpu_custom_call.1
$region0: #{tpu_custom_call.1}
  #allocation0 [shape = 'u32[]', space=smem, size = 0x4, offset = 0x4, fixed_abs, tag = 'smem constant byte address 0x4 - core index']
  #allocation1 [shape = 'u32[72,128]{1,0:T(1,128)}', space=vmem, size = 0x9000, scoped, tag = 'internal scratch']
  %s0 = inlined_call_operand.vmem [shape: f32[8,128], index: 0, kind: input, shape index: {}]
  %s1 = inlined_call_operand.vmem [shape: f32[128,8], index: 1, kind: input, shape index: {}]
  %s2 = inlined_call_operand.vmem [shape: f32[8,128], index: 2, kind: input, shape index: {}]
  %s3 = inlined_call_operand.vmem [shape: f32[1,128], index: 3, kind: input, shape index: {}]
  %s4 = inlined_call_operand.hbm [shape: f32[8,128], index: 4, kind: output, shape index: {}]
  %s5 = sld [smem:[#allocation0]]
  $region26: #{tpu_custom_call.1} parent=0
    _
  %s7 = ssub.s32 1, %s5
  %s8 = scalar_select 0, %s7, %s5
  $region1: #{tpu_custom_call.1} parent=0
    #allocation2 [shape = 'u8[4096]{0}', space=vmem, size = 0x1000, scoped, tag = 'output window, operand 0, single buffered']
    #allocation3 [shape = 's32[1]{0}', space=sflag, size = 0x4, scoped, tag = 'scoped memory for tpu_custom_call.1']
    %9 = vsyncpa [#allocation3], 0
    // Predicated region
    $region2: #{tpu_custom_call.1} parent=1 // pred_check
      _
    $region3: #{tpu_custom_call.1} parent=1 // pred_check_branch
      %11 = sbr.rel (0) target = $region5
    $region4: #{tpu_custom_call.1} parent=1 // pred_region
      _
    $region5: #{tpu_custom_call.1} parent=1 // pred_fallthru
      _
    // Predicated region
    $region6: #{tpu_custom_call.1} parent=1 // pred_check
      _
    $region7: #{tpu_custom_call.1} parent=1 // pred_check_branch
      %13 = sbr.rel (0) target = $region9
    $region8: #{tpu_custom_call.1} parent=1 // pred_region
      _
    $region9: #{tpu_custom_call.1} parent=1 // pred_fallthru
      _
    // Predicated region
    $region10: #{tpu_custom_call.1} parent=1 // pred_check
      _
    $region11: #{tpu_custom_call.1} parent=1 // pred_check_branch
      %15 = sbr.rel (0) target = $region13
    $region12: #{tpu_custom_call.1} parent=1 // pred_region
      _
    $region13: #{tpu_custom_call.1} parent=1 // pred_fallthru
      _
    // Predicated region
    $region14: #{tpu_custom_call.1} parent=1 // pred_check
      _
    $region15: #{tpu_custom_call.1} parent=1 // pred_check_branch
      %17 = sbr.rel (0) target = $region17
    $region16: #{tpu_custom_call.1} parent=1 // pred_region
      _
    $region17: #{tpu_custom_call.1} parent=1 // pred_fallthru
      _
    %v18 = vld [vmem:[%s1] sm:$0xff]
    %v19 = vld [vmem:[%s1 + $0x8] sm:$0xff]
    %v20 = vld [vmem:[%s1 + $0x10] sm:$0xff]
    %v21 = vld [vmem:[%s1 + $0x18] sm:$0xff]
    %v22 = vld [vmem:[%s1 + $0x20] sm:$0xff]
    %v23 = vld [vmem:[%s1 + $0x28] sm:$0xff]
    %v24 = vld [vmem:[%s1 + $0x30] sm:$0xff]
    %v25 = vld [vmem:[%s1 + $0x38] sm:$0xff]
    %v26 = vld [vmem:[%s1 + $0x40] sm:$0xff]
    %v27 = vld [vmem:[%s1 + $0x48] sm:$0xff]
    %v28 = vld [vmem:[%s1 + $0x50] sm:$0xff]
    %v29 = vld [vmem:[%s1 + $0x58] sm:$0xff]
    %v30 = vld [vmem:[%s1 + $0x60] sm:$0xff]
    %v31 = vld [vmem:[%s1 + $0x68] sm:$0xff]
    %v32 = vld [vmem:[%s1 + $0x70] sm:$0xff]
    %v33 = vld [vmem:[%s1 + $0x78] sm:$0xff]
    %v34 = vld [vmem:[%s2] sm:$0xff]
    %vm35 = vcmask 64512
    %v37 = vsel %vm35, %v18, 0
    %v40 = vsel %vm35, %v19, 0
    %v43 = vsel %vm35, %v20, 0
    %v46 = vsel %vm35, %v21, 0
    %v49 = vsel %vm35, %v22, 0
    %v52 = vsel %vm35, %v23, 0
    %v55 = vsel %vm35, %v24, 0
    %v58 = vsel %vm35, %v25, 0
    %v61 = vsel %vm35, %v26, 0
    %v64 = vsel %vm35, %v27, 0
    %v67 = vsel %vm35, %v28, 0
    %v70 = vsel %vm35, %v29, 0
    %v73 = vsel %vm35, %v30, 0
    %v76 = vsel %vm35, %v31, 0
    %v79 = vsel %vm35, %v32, 0
    %v82 = vsel %vm35, %v33, 0
    %84 = vmatpush.msra.mxu0 0.0
    %85 = vmatpush.msra.mxu0 0.0
    %86 = vmatpush.msra.mxu0 0.0
    %87 = vmatpush.msra.mxu0 0.0
    %88 = vmatpush.msra.mxu0 0.0
    %89 = vmatpush.msra.mxu0 0.0
    %90 = vmatpush.msra.mxu0 0.0
    %91 = vmatpush.msra.mxu0 0.0
    %92 = vmatpush.msra.mxu0 0.0
    %93 = vmatpush.msra.mxu0 0.0
    %94 = vmatpush.msra.mxu0 0.0
    %95 = vmatpush.msra.mxu0 0.0
    %96 = vmatpush.msra.mxu0 0.0
    %97 = vmatpush.msra.mxu0 0.0
    %98 = vmatpush.msra.mxu0 0.0
    %99 = vmatpush.msra.mxu0 %v34
    %100 = vmatmul.f32.gmra.mxu0 %v37
    %v101 = vpop.f32.mrf.mxu0
    %v102 = vadd.f32 0.0, %v101
    %103 = vmatmul.f32.gmra.mxu0 %v40
    %v104 = vpop.f32.mrf.mxu0
    %v105 = vadd.f32 0.0, %v104
    %106 = vmatmul.f32.gmra.mxu0 %v43
    %v107 = vpop.f32.mrf.mxu0
    %v108 = vadd.f32 0.0, %v107
    %109 = vmatmul.f32.gmra.mxu0 %v46
    %v110 = vpop.f32.mrf.mxu0
    %v111 = vadd.f32 0.0, %v110
    %112 = vmatmul.f32.gmra.mxu0 %v49
    %v113 = vpop.f32.mrf.mxu0
    %v114 = vadd.f32 0.0, %v113
    %115 = vmatmul.f32.gmra.mxu0 %v52
    %v116 = vpop.f32.mrf.mxu0
    %v117 = vadd.f32 0.0, %v116
    %118 = vmatmul.f32.gmra.mxu0 %v55
    %v119 = vpop.f32.mrf.mxu0
    %v120 = vadd.f32 0.0, %v119
    %121 = vmatmul.f32.gmra.mxu0 %v58
    %v122 = vpop.f32.mrf.mxu0
    %v123 = vadd.f32 0.0, %v122
    %124 = vmatmul.f32.gmra.mxu0 %v61
    %v125 = vpop.f32.mrf.mxu0
    %v126 = vadd.f32 0.0, %v125
    %127 = vmatmul.f32.gmra.mxu0 %v64
    %v128 = vpop.f32.mrf.mxu0
    %v129 = vadd.f32 0.0, %v128
    %130 = vmatmul.f32.gmra.mxu0 %v67
    %v131 = vpop.f32.mrf.mxu0
    %v132 = vadd.f32 0.0, %v131
    %133 = vmatmul.f32.gmra.mxu0 %v70
    %v134 = vpop.f32.mrf.mxu0
    %v135 = vadd.f32 0.0, %v134
    %136 = vmatmul.f32.gmra.mxu0 %v73
    %v137 = vpop.f32.mrf.mxu0
    %v138 = vadd.f32 0.0, %v137
    %139 = vmatmul.f32.gmra.mxu0 %v76
    %v140 = vpop.f32.mrf.mxu0
    %v141 = vadd.f32 0.0, %v140
    %142 = vmatmul.f32.gmra.mxu0 %v79
    %v143 = vpop.f32.mrf.mxu0
    %v144 = vadd.f32 0.0, %v143
    %145 = vmatmul.f32.gmra.mxu0 %v82
    %v146 = vpop.f32.mrf.mxu0
    %v147 = vadd.f32 0.0, %v146
    %148 = vdwg.mxu0
    %v149 = vld [vmem:[%s0] sm:$0xff]
    %v150 = vld [vmem:[%s3] sm:$0x1]
    %v152 = vperm.slane %v150, 0
    %154 = vmatpush.msra.mxu0 %v147
    %155 = vmatpush.msra.mxu0 %v144
    %156 = vmatpush.msra.mxu0 %v141
    %157 = vmatpush.msra.mxu0 %v138
    %158 = vmatpush.msra.mxu0 %v135
    %159 = vmatpush.msra.mxu0 %v132
    %160 = vmatpush.msra.mxu0 %v129
    %161 = vmatpush.msra.mxu0 %v126
    %162 = vmatpush.msra.mxu0 %v123
    %163 = vmatpush.msra.mxu0 %v120
    %164 = vmatpush.msra.mxu0 %v117
    %165 = vmatpush.msra.mxu0 %v114
    %166 = vmatpush.msra.mxu0 %v111
    %167 = vmatpush.msra.mxu0 %v108
    %168 = vmatpush.msra.mxu0 %v105
    %169 = vmatpush.msra.mxu0 %v102
    %170 = vmatmul.f32.gmra.mxu0 %v149
    %v171 = vpop.f32.mrf.mxu0
    %v172 = vadd.f32 %v152, %v171
    %173 = vdwg.mxu0
    %174 = vst [vmem:[#allocation2] sm:$0xff] %v172
    // Predicated region
    $region18: #{tpu_custom_call.1} parent=1 // pred_check
      _
    $region19: #{tpu_custom_call.1} parent=1 // pred_check_branch
      %176 = sbr.rel (0) target = $region21
    $region20: #{tpu_custom_call.1} parent=1 // pred_region
      %178 = vsyncadd [#allocation3], 0
      %s180 = sshll.u32 [#allocation2], 4
      %s181 = int_to_ptr.vmem [resolvable:$true] %s180
      %s182 = sshll.u32 %s4, 4
      %s183 = int_to_ptr.hbm [resolvable:$true] %s182
      %185 = dma.vmem_to_hbm [thread:$0]  %s181, 128, %s183, [#allocation3]
    $region21: #{tpu_custom_call.1} parent=1 // pred_fallthru
      _
    // Predicated region
    $region22: #{tpu_custom_call.1} parent=1 // pred_check
      _
    $region23: #{tpu_custom_call.1} parent=1 // pred_check_branch
      %187 = sbr.rel (0) target = $region25
    $region24: #{tpu_custom_call.1} parent=1 // pred_region
      %189 = dma.done [#allocation3], 128
    $region25: #{tpu_custom_call.1} parent=1 // pred_fallthru
      _
    %190 = vsyncpa [#allocation3], 1

</llo_original>
